<compile_context>
chip_gen: v5e
topology: v5e:2x2
jax: 0.10.0
libtpu: 0.0.40
codegen_flags: <defaults>
</compile_context>

<pallas_src>
import functools

import jax
import jax.numpy as jnp
from jax.experimental import pallas as pl
from jax.experimental.pallas import tpu as pltpu


def _round_up(x, m):
    return ((x + m - 1) // m) * m


def _vmem_budget_bytes():
    """Generation-aware VMEM budget: ~half of physical, capped at 64 MiB."""
    try:
        cap = int(pltpu.get_tpu_info().vmem_capacity_bytes)
    except Exception:
        cap = 64 << 20  # conservative (v7x-sized) default
    return min(cap // 2, 64 << 20)


def _head_kernel(x_ref, w1_ref, b1_ref, w2_ref, b2_ref, o_ref, *, compute_dtype):
    # Cast of x to the MXU operand dtype happens here (hidden under the DMA).
    x = x_ref[...].astype(compute_dtype)
    # Hidden layer on the MXU with f32 accumulation; bias + ReLU epilogue kept
    # in f32 (VPU f32 path works on v5e/v6e/v7x).
    h = jnp.dot(x, w1_ref[...], preferred_element_type=jnp.float32)
    h = jnp.maximum(h + b1_ref[...], 0.0)
    # TODO(synk): dropout after ReLU is inference-mode identity; not applied.
    logits = jnp.dot(h.astype(compute_dtype), w2_ref[...],
                     preferred_element_type=jnp.float32)
    # Compact-C store: last block dim == full array dim (C), so no padded
    # writeback and no post-kernel slice pass.
    o_ref[...] = (logits + b2_ref[...]).astype(o_ref.dtype)


def _choose_tile_n(n, d, h_pad, c, budget_bytes):
    """Pick a node-tile size against the VMEM budget; None => weights don't fit."""
    f32 = 4
    d_lanes = _round_up(d, 128)          # x rows occupy full 128-lane vregs in VMEM
    c_lanes = _round_up(c, 128)          # out rows likewise (lane padding in VMEM)
    # Resident weights/biases (f32 worst case, sublane-padded biases).
    weights_bytes = f32 * (d * h_pad + h_pad * c_lanes + 8 * h_pad + 8 * c_lanes)
    # Per row: double-buffered x (f32) + double-buffered out (f32) + f32 hidden
    # activation + bf16 temporaries for the casts.
    per_row_bytes = f32 * (2 * d_lanes + 2 * c_lanes + h_pad) + 2 * (d_lanes + h_pad)
    headroom = budget_bytes - weights_bytes
    if headroom < 8 * per_row_bytes:
        return None  # weights themselves don't fit -> fallback path
    tn = headroom // per_row_bytes
    tn = min(tn, 4096)                                   # amortize per-step overhead
    # Keep the grid at >= ~4 steps so v7x's two TensorCores each pipeline >= 2.
    tn = min(tn, _round_up(pl.cdiv(max(n, 1), 4), 8))
    tn = max(8, tn - (tn % 8))
    return int(tn)


def prepare_head_params(w1, b1, w2, b2, compute_dtype=jnp.bfloat16):
    """Pad/cast weights once (hoisted out of the per-call path).

    w1: [D, H], b1: [H], w2: [H, C], b2: [C]  ->  (w1p, b1p, w2p, b2p)
    H is padded to a multiple of 128 so both MXU matmuls use full lanes; padded
    hidden units are relu(0 + 0) = 0 and feed zero W2 rows, so semantics are
    unchanged.  C is kept compact (output written as [N, C]).
    """
    d, h_dim = w1.shape
    c = w2.shape[1]
    h_pad = _round_up(h_dim, 128)
    cdt = compute_dtype
    w1p = jnp.zeros((d, h_pad), cdt).at[:, :h_dim].set(w1.astype(cdt))
    b1p = jnp.zeros((1, h_pad), jnp.float32).at[:, :h_dim].set(b1.astype(jnp.float32))
    w2p = jnp.zeros((h_pad, c), cdt).at[:h_dim, :].set(w2.astype(cdt))
    b2p = b2.astype(jnp.float32).reshape(1, c)
    return w1p, b1p, w2p, b2p


@functools.partial(jax.jit, static_argnames=("compute_dtype", "tile_n", "vmem_limit"))
def _forward(x, w1p, b1p, w2p, b2p, *, compute_dtype, tile_n, vmem_limit):
    n, d = x.shape
    h_pad = w1p.shape[1]
    c = w2p.shape[1]
    grid = (pl.cdiv(n, tile_n),)
    kernel = functools.partial(_head_kernel, compute_dtype=compute_dtype)
    return pl.pallas_call(
        kernel,
        out_shape=jax.ShapeDtypeStruct((n, c), jnp.float32),
        grid_spec=pltpu.PrefetchScalarGridSpec(
            num_scalar_prefetch=0,
            grid=grid,
            in_specs=[
                pl.BlockSpec((tile_n, d), lambda i: (i, 0)),    # x tile (pipelined)
                # TODO(synk): mark the constant-index weight/bias specs with
                # pipeline_mode=pl.Buffered(1) to skip double-buffering resident
                # weights at production sizes (negligible at these shapes).
                pl.BlockSpec((d, h_pad), lambda i: (0, 0)),     # W1 (VMEM-resident)
                pl.BlockSpec((1, h_pad), lambda i: (0, 0)),     # b1
                pl.BlockSpec((h_pad, c), lambda i: (0, 0)),     # W2 (VMEM-resident)
                pl.BlockSpec((1, c), lambda i: (0, 0)),         # b2
            ],
            out_specs=pl.BlockSpec((tile_n, c), lambda i: (i, 0)),
        ),
        compiler_params=pltpu.CompilerParams(
            # Rows are independent -> parallel axis (sharded across the two
            # TensorCores on v7x; measured-neutral on v5e/v6e).
            dimension_semantics=("parallel",),
            vmem_limit_bytes=int(vmem_limit),
        ),
    )(x, w1p, b1p, w2p, b2p)


def node_classification_head(embeddings, w1p, b1p, w2p, b2p, node_indices=None,
                             *, compute_dtype=jnp.bfloat16, tile_n=None):
    """Pallas forward of NodeClassificationHead (hidden_dim path).

    embeddings: [N, D] f32; (w1p, b1p, w2p, b2p) from prepare_head_params.
    node_indices: optional [M] int32 row gather (plain-JAX glue).
    Returns f32 logits of shape [M or N, C].
    """
    # TODO(synk): fold this gather into the kernel with scalar-prefetch row
    # gather (pl.Element index_map) to avoid the extra HBM round trip.
    x = embeddings if node_indices is None else embeddings[node_indices]

    n, d = x.shape
    h_pad = w1p.shape[1]
    c = w2p.shape[1]

    budget = _vmem_budget_bytes()
    tn = tile_n if tile_n is not None else _choose_tile_n(n, d, h_pad, c, budget)
    if tn is None:
        # Resident weights exceed the VMEM budget.
        # TODO(synk): add an H-reduction ("arbitrary") grid axis with a
        # pl.when-initialized accumulator instead of this plain-JAX fallback.
        h = jnp.maximum(
            jnp.dot(x.astype(compute_dtype), w1p,
                    preferred_element_type=jnp.float32) + b1p, 0.0)
        return jnp.dot(h.astype(compute_dtype), w2p,
                       preferred_element_type=jnp.float32) + b2p

    return _forward(x, w1p, b1p, w2p, b2p, compute_dtype=compute_dtype,
                    tile_n=int(tn), vmem_limit=budget)


def _init_linear(key, fan_in, fan_out):
    """Deterministic init matching torch.nn.Linear default (uniform +-1/sqrt(fan_in)).

    Weight is returned as [fan_in, fan_out] (already transposed for x @ W).
    """
    kw, kb = jax.random.split(key)
    bound = 1.0 / jnp.sqrt(float(fan_in))
    w = jax.random.uniform(kw, (fan_in, fan_out), jnp.float32, -bound, bound)
    b = jax.random.uniform(kb, (fan_out,), jnp.float32, -bound, bound)
    return w, b


def _reference(x, w1, b1, w2, b2, compute_dtype=jnp.float32):
    cdt = compute_dtype
    h = jnp.dot(x.astype(cdt), w1.astype(cdt), preferred_element_type=jnp.float32)
    h = jnp.maximum(h + b1, 0.0)
    return jnp.dot(h.astype(cdt), w2.astype(cdt),
                   preferred_element_type=jnp.float32) + b2


if __name__ == "__main__":
    # Small shapes: 16 nodes, embedding_dim=32, hidden_dim=64, num_classes=10
    N, D, H, C = 16, 32, 64, 10

    key = jax.random.PRNGKey(0)
    k_emb, k_l1, k_l2 = jax.random.split(key, 3)

    embeddings = jax.random.normal(k_emb, (N, D), jnp.float32)
    w1, b1 = _init_linear(k_l1, D, H)   # classifier[0]: Linear(embedding_dim, hidden_dim)
    w2, b2 = _init_linear(k_l2, H, C)   # classifier[3]: Linear(hidden_dim, num_classes)

    # Prepare padded/cast weights once (hoisted out of the per-call path).
    params_bf16 = prepare_head_params(w1, b1, w2, b2, compute_dtype=jnp.bfloat16)
    params_f32 = prepare_head_params(w1, b1, w2, b2, compute_dtype=jnp.float32)

    # Case 1: classify all nodes, default bf16 MXU operands (f32 accumulation)
    logits_all = jax.block_until_ready(
        node_classification_head(embeddings, *params_bf16))
    ref_bf16 = _reference(embeddings, w1, b1, w2, b2, compute_dtype=jnp.bfloat16)
    assert logits_all.shape == (N, C)
    assert jnp.allclose(logits_all, ref_bf16, atol=5e-3, rtol=5e-3)

    # Case 2: full-precision f32 path
    logits_f32 = jax.block_until_ready(
        node_classification_head(embeddings, *params_f32,
                                 compute_dtype=jnp.float32))
    ref_f32 = _reference(embeddings, w1, b1, w2, b2)
    assert logits_f32.shape == (N, C)
    assert jnp.allclose(logits_f32, ref_f32, atol=1e-5, rtol=1e-5)

    # Case 3: classify a subset via node_indices
    node_indices = jnp.array([0, 3, 5, 7, 8, 11, 13, 15], dtype=jnp.int32)
    logits_sub = jax.block_until_ready(
        node_classification_head(embeddings, *params_f32, node_indices,
                                 compute_dtype=jnp.float32))
    ref_sub = _reference(embeddings[node_indices], w1, b1, w2, b2)
    assert logits_sub.shape == (node_indices.shape[0], C)
    assert jnp.allclose(logits_sub, ref_sub, atol=1e-5, rtol=1e-5)

    # Case 4: multi-tile grid with N not a multiple of the tile
    # (exercises the ragged final block / masked output write + pipelined grid).
    N2 = 100
    emb2 = jax.random.normal(jax.random.PRNGKey(1), (N2, D), jnp.float32)
    logits2 = jax.block_until_ready(
        node_classification_head(emb2, *params_f32,
                                 compute_dtype=jnp.float32, tile_n=32))
    ref2 = _reference(emb2, w1, b1, w2, b2)
    assert logits2.shape == (N2, C)
    assert jnp.allclose(logits2, ref2, atol=1e-5, rtol=1e-5)

    print("KERNEL_OK")
</pallas_src>

<mosaic_0001>
module attributes {stable_mosaic.version = 11 : i64} {
  func.func @_head_kernel(%arg0: i32, %arg1: memref<8x32xf32, #tpu.memory_space<vmem>>, %arg2: memref<32x128xbf16, #tpu.memory_space<vmem>>, %arg3: memref<1x128xf32, #tpu.memory_space<vmem>>, %arg4: memref<128x10xbf16, #tpu.memory_space<vmem>>, %arg5: memref<1x10xf32, #tpu.memory_space<vmem>>, %arg6: memref<8x10xf32, #tpu.memory_space<vmem>>) attributes {dimension_semantics = [#tpu.dimension_semantics<parallel>], iteration_bounds = array<i64: 2>, scalar_prefetch = 0 : i64, scratch_operands = 0 : i64, tpu.core_type = #tpu.core_type<tc>, window_params = [{transform_indices = @transform_0, window_bounds = array<i64: 8, 32>}, {pipeline_mode = #tpu.pipeline_mode<synchronous>, transform_indices = @transform_1, window_bounds = array<i64: 32, 128>}, {pipeline_mode = #tpu.pipeline_mode<synchronous>, transform_indices = @transform_2, window_bounds = array<i64: 1, 128>}, {pipeline_mode = #tpu.pipeline_mode<synchronous>, transform_indices = @transform_3, window_bounds = array<i64: 128, 10>}, {pipeline_mode = #tpu.pipeline_mode<synchronous>, transform_indices = @transform_4, window_bounds = array<i64: 1, 10>}, {transform_indices = @transform_5, window_bounds = array<i64: 8, 10>}]} {
    %c0 = arith.constant 0 : index
    %c0_0 = arith.constant 0 : index
    %0 = vector.load %arg1[%c0, %c0_0] : memref<8x32xf32, #tpu.memory_space<vmem>>, vector<8x32xf32>
    %1 = arith.truncf %0 : vector<8x32xf32> to vector<8x32xbf16>
    %c0_1 = arith.constant 0 : index
    %c0_2 = arith.constant 0 : index
    %2 = vector.load %arg2[%c0_1, %c0_2] : memref<32x128xbf16, #tpu.memory_space<vmem>>, vector<32x128xbf16>
    %cst = arith.constant dense<0.000000e+00> : vector<8x128xf32>
    %3 = tpu.matmul %1, %2, %cst {dimension_numbers = #tpu.dot_dimension_numbers<[1], [0], [0], [1], [0, 0, 1, 1], [], []>} : vector<8x32xbf16>, vector<32x128xbf16>, vector<8x128xf32> -> vector<8x128xf32>
    %c0_3 = arith.constant 0 : index
    %c0_4 = arith.constant 0 : index
    %4 = vector.load %arg3[%c0_3, %c0_4] : memref<1x128xf32, #tpu.memory_space<vmem>>, vector<1x128xf32>
    %5 = vector.broadcast %4 : vector<1x128xf32> to vector<8x128xf32>
    %6 = arith.addf %3, %5 : vector<8x128xf32>
    %cst_5 = arith.constant 0.000000e+00 : f32
    %7 = vector.broadcast %cst_5 : f32 to vector<8x128xf32>
    %8 = arith.maximumf %6, %7 : vector<8x128xf32>
    %9 = arith.truncf %8 : vector<8x128xf32> to vector<8x128xbf16>
    %c0_6 = arith.constant 0 : index
    %c0_7 = arith.constant 0 : index
    %10 = vector.load %arg4[%c0_6, %c0_7] : memref<128x10xbf16, #tpu.memory_space<vmem>>, vector<128x10xbf16>
    %cst_8 = arith.constant dense<0.000000e+00> : vector<8x10xf32>
    %11 = tpu.matmul %9, %10, %cst_8 {dimension_numbers = #tpu.dot_dimension_numbers<[1], [0], [0], [1], [0, 0, 1, 1], [], []>} : vector<8x128xbf16>, vector<128x10xbf16>, vector<8x10xf32> -> vector<8x10xf32>
    %c0_9 = arith.constant 0 : index
    %c0_10 = arith.constant 0 : index
    %12 = vector.load %arg5[%c0_9, %c0_10] : memref<1x10xf32, #tpu.memory_space<vmem>>, vector<1x10xf32>
    %13 = vector.broadcast %12 : vector<1x10xf32> to vector<8x10xf32>
    %14 = arith.addf %11, %13 : vector<8x10xf32>
    %c0_11 = arith.constant 0 : index
    %c0_12 = arith.constant 0 : index
    %15 = vector.load %arg6[%c0_11, %c0_12] : memref<8x10xf32, #tpu.memory_space<vmem>>, vector<8x10xf32>
    tpu.vector_store %arg6[%c0_11, %c0_12], %14 {strides = array<i32>} : memref<8x10xf32, #tpu.memory_space<vmem>>, vector<8x10xf32>,
    return
  }
  func.func @transform_0(%arg0: i32) -> (i32, i32) {
    %c0_i32 = arith.constant 0 : i32
    %c0_i32_0 = arith.constant 0 : i32
    return %arg0, %c0_i32 : i32, i32
  }
  func.func @transform_1(%arg0: i32) -> (i32, i32) {
    %c0_i32 = arith.constant 0 : i32
    %c0_i32_0 = arith.constant 0 : i32
    %c0_i32_1 = arith.constant 0 : i32
    return %c0_i32, %c0_i32_0 : i32, i32
  }
  func.func @transform_2(%arg0: i32) -> (i32, i32) {
    %c0_i32 = arith.constant 0 : i32
    %c0_i32_0 = arith.constant 0 : i32
    %c0_i32_1 = arith.constant 0 : i32
    return %c0_i32, %c0_i32_0 : i32, i32
  }
  func.func @transform_3(%arg0: i32) -> (i32, i32) {
    %c0_i32 = arith.constant 0 : i32
    %c0_i32_0 = arith.constant 0 : i32
    %c0_i32_1 = arith.constant 0 : i32
    return %c0_i32, %c0_i32_0 : i32, i32
  }
  func.func @transform_4(%arg0: i32) -> (i32, i32) {
    %c0_i32 = arith.constant 0 : i32
    %c0_i32_0 = arith.constant 0 : i32
    %c0_i32_1 = arith.constant 0 : i32
    return %c0_i32, %c0_i32_0 : i32, i32
  }
  func.func @transform_5(%arg0: i32) -> (i32, i32) {
    %c0_i32 = arith.constant 0 : i32
    %c0_i32_0 = arith.constant 0 : i32
    return %arg0, %c0_i32 : i32, i32
  }
}

</mosaic_0001>

<llo_original>
// kernel: _forward.1
$region0: #{_forward.1}
  #allocation0 [shape = 'u32[]', space=smem, size = 0x4, offset = 0x4, fixed_abs, tag = 'smem constant byte address 0x4 - core index']
  #allocation1 [shape = 'u32[72,128]{1,0:T(1,128)}', space=vmem, size = 0x9000, scoped, tag = 'internal scratch']
  %s0 = inlined_call_operand.vmem [shape: f32[16,32], index: 0, kind: input, shape index: {}]
  %s1 = inlined_call_operand.vmem [shape: bf16[32,128], index: 1, kind: input, shape index: {}]
  %s2 = inlined_call_operand.vmem [shape: f32[1,128], index: 2, kind: input, shape index: {}]
  %s3 = inlined_call_operand.vmem [shape: bf16[128,10], index: 3, kind: input, shape index: {}]
  %s4 = inlined_call_operand.vmem [shape: f32[1,10], index: 4, kind: input, shape index: {}]
  %s5 = inlined_call_operand.hbm [shape: f32[16,10], index: 5, kind: output, shape index: {}]
  %s6 = sld [smem:[#allocation0]]
  $region53: #{_forward.1} parent=0
    _
  %s8 = ssub.s32 1, %s6
  %s9 = scalar_select 0, %s8, %s6
  $region1: #{_forward.1} parent=0
    #allocation2 [shape = 'u8[8192]{0}', space=vmem, size = 0x2000, scoped, tag = 'output window, operand 0']
    #allocation3 [shape = 's32[2]{0}', space=sflag, size = 0x8, scoped, tag = 'scoped memory for _forward.1']
    %10 = vsyncpa [#allocation3], 0
    %s11 = scalar_lea.sflag [#allocation3], 1
    %12 = vsyncpa %s11, 0
    loop: start=0, step=1, limit=4
    $region2: #{_forward.1} parent=1 // loop_pre_header
      _
    $region3: #{_forward.1} parent=1 // loop_header
      %s14 = sphi 0, %s18
      %p15 = scmp.ge.s32.totalorder %s14, 4
      %s24 = sphi 0, %s26
      %s27 = sphi 0, %s24
      %s28 = sphi 0, %s27
      %s44 = sphi 0, %s28
      %s48 = sphi 0, %s48
      %s50 = sphi 0, %s48
      %s51 = sphi 0, %s50
      %s65 = sphi 0, %s51
      %s69 = sphi 0, %s69
      %s71 = sphi 0, %s69
      %s72 = sphi 0, %s71
      %s86 = sphi 0, %s72
      %s90 = sphi 0, %s90
      %s92 = sphi 0, %s90
      %s93 = sphi 0, %s92
      %s107 = sphi 0, %s93
      %s111 = sphi 0, %s111
      %s113 = sphi 0, %s111
      %s114 = sphi 0, %s113
      %s128 = sphi 0, %s114
      %s134 = sphi 0, %s136
      %s137 = sphi 0, %s134
      %s138 = sphi 0, %s137
      %s154 = sphi 0, %s138
    $region4: #{_forward.1} parent=1 // loop_header_branch
      %17 = sbr.rel (%p15) target = $region8
    $region5: #{_forward.1} parent=1 // loop_body
      %s19 = ssub.s32 %s14, 1
      %s20 = ssub.s32 %s14, 2
      %s21 = sadd.s32 %s14, 1
      %s22 = ssub.s32 %s14, %s21
      %p23 = scmp.eq.s32.totalorder %s22, 0
      %s25 = sadd.s32 %s24, 1
      %s26 = scalar_select %p23, %s24, %s25
      %p29 = pneg %p23
      %p30 = scmp.eq.s32.totalorder %s14, 1
      %p31 = por %p29, %p30
      %p32 = scmp.ne.s32.totalorder %s24, %s27
      %p33 = scmp.eq.s32.totalorder %s14, 0
      %p34 = por %p32, %p33
      %p35 = scmp.ne.s32.totalorder %s24, %s27
      %p36 = scmp.eq.s32.totalorder %s19, 1
      %p37 = por %p35, %p36
      %p38 = scmp.ne.s32.totalorder %s27, %s28
      %p39 = scmp.eq.s32.totalorder %s19, 0
      %p40 = por %p38, %p39
      %p41 = scmp.ne.s32.totalorder %s27, %s28
      %p42 = scmp.eq.s32.totalorder %s20, 1
      %p43 = por %p41, %p42
      %p45 = scmp.ne.s32.totalorder %s28, %s44
      %p46 = scmp.eq.s32.totalorder %s20, 0
      %p47 = por %p45, %p46
      %s49 = sadd.s32 %s48, 1
      %p52 = scmp.eq.s32.totalorder %s14, 1
      %p53 = scmp.ne.s32.totalorder %s48, %s50
      %p54 = scmp.eq.s32.totalorder %s14, 0
      %p55 = por %p53, %p54
      %p56 = scmp.ne.s32.totalorder %s48, %s50
      %p57 = scmp.eq.s32.totalorder %s19, 1
      %p58 = por %p56, %p57
      %p59 = scmp.ne.s32.totalorder %s50, %s51
      %p60 = scmp.eq.s32.totalorder %s19, 0
      %p61 = por %p59, %p60
      %p62 = scmp.ne.s32.totalorder %s50, %s51
      %p63 = scmp.eq.s32.totalorder %s20, 1
      %p64 = por %p62, %p63
      %p66 = scmp.ne.s32.totalorder %s51, %s65
      %p67 = scmp.eq.s32.totalorder %s20, 0
      %p68 = por %p66, %p67
      %s70 = sadd.s32 %s69, 1
      %p73 = scmp.eq.s32.totalorder %s14, 1
      %p74 = scmp.ne.s32.totalorder %s69, %s71
      %p75 = scmp.eq.s32.totalorder %s14, 0
      %p76 = por %p74, %p75
      %p77 = scmp.ne.s32.totalorder %s69, %s71
      %p78 = scmp.eq.s32.totalorder %s19, 1
      %p79 = por %p77, %p78
      %p80 = scmp.ne.s32.totalorder %s71, %s72
      %p81 = scmp.eq.s32.totalorder %s19, 0
      %p82 = por %p80, %p81
      %p83 = scmp.ne.s32.totalorder %s71, %s72
      %p84 = scmp.eq.s32.totalorder %s20, 1
      %p85 = por %p83, %p84
      %p87 = scmp.ne.s32.totalorder %s72, %s86
      %p88 = scmp.eq.s32.totalorder %s20, 0
      %p89 = por %p87, %p88
      %s91 = sadd.s32 %s90, 1
      %p94 = scmp.eq.s32.totalorder %s14, 1
      %p95 = scmp.ne.s32.totalorder %s90, %s92
      %p96 = scmp.eq.s32.totalorder %s14, 0
      %p97 = por %p95, %p96
      %p98 = scmp.ne.s32.totalorder %s90, %s92
      %p99 = scmp.eq.s32.totalorder %s19, 1
      %p100 = por %p98, %p99
      %p101 = scmp.ne.s32.totalorder %s92, %s93
      %p102 = scmp.eq.s32.totalorder %s19, 0
      %p103 = por %p101, %p102
      %p104 = scmp.ne.s32.totalorder %s92, %s93
      %p105 = scmp.eq.s32.totalorder %s20, 1
      %p106 = por %p104, %p105
      %p108 = scmp.ne.s32.totalorder %s93, %s107
      %p109 = scmp.eq.s32.totalorder %s20, 0
      %p110 = por %p108, %p109
      %s112 = sadd.s32 %s111, 1
      %p115 = scmp.eq.s32.totalorder %s14, 1
      %p116 = scmp.ne.s32.totalorder %s111, %s113
      %p117 = scmp.eq.s32.totalorder %s14, 0
      %p118 = por %p116, %p117
      %p119 = scmp.ne.s32.totalorder %s111, %s113
      %p120 = scmp.eq.s32.totalorder %s19, 1
      %p121 = por %p119, %p120
      %p122 = scmp.ne.s32.totalorder %s113, %s114
      %p123 = scmp.eq.s32.totalorder %s19, 0
      %p124 = por %p122, %p123
      %p125 = scmp.ne.s32.totalorder %s113, %s114
      %p126 = scmp.eq.s32.totalorder %s20, 1
      %p127 = por %p125, %p126
      %p129 = scmp.ne.s32.totalorder %s114, %s128
      %p130 = scmp.eq.s32.totalorder %s20, 0
      %p131 = por %p129, %p130
      %s132 = ssub.s32 %s14, %s21
      %p133 = scmp.eq.s32.totalorder %s132, 0
      %s135 = sadd.s32 %s134, 1
      %s136 = scalar_select %p133, %s134, %s135
      %p139 = pneg %p133
      %p140 = scmp.eq.s32.totalorder %s14, 1
      %p141 = por %p139, %p140
      %p142 = scmp.ne.s32.totalorder %s134, %s137
      %p143 = scmp.eq.s32.totalorder %s14, 0
      %p144 = por %p142, %p143
      %p145 = scmp.ne.s32.totalorder %s134, %s137
      %p146 = scmp.eq.s32.totalorder %s19, 1
      %p147 = por %p145, %p146
      %p148 = scmp.ne.s32.totalorder %s137, %s138
      %p149 = scmp.eq.s32.totalorder %s19, 0
      %p150 = por %p148, %p149
      %p151 = scmp.ne.s32.totalorder %s137, %s138
      %p152 = scmp.eq.s32.totalorder %s20, 1
      %p153 = por %p151, %p152
      %p155 = scmp.ne.s32.totalorder %s138, %s154
      %p156 = scmp.eq.s32.totalorder %s20, 0
      %p157 = por %p155, %p156
      %p158 = scmp.le.s32.totalorder 1, %s14
      %p159 = scmp.lt.s32.totalorder %s14, 3
      %p160 = pnand %p158, %p159
      %p161 = pneg %p160
      // Predicated region
      $region9: #{_forward.1} parent=5 // pred_check
        _
      $region10: #{_forward.1} parent=5 // pred_check_branch
        %163 = sbr.rel (%p160) target = $region12
      $region11: #{_forward.1} parent=5 // pred_region
        %s164 = ssub.s32 %s14, 1
        // Predicated region
        $region13: #{_forward.1} parent=11 // pred_check
          %p165 = pneg %p61
        $region14: #{_forward.1} parent=11 // pred_check_branch
          %167 = sbr.rel (%p165) target = $region16
        $region15: #{_forward.1} parent=11 // pred_region
          _
        $region16: #{_forward.1} parent=11 // pred_fallthru
          _
        // Predicated region
        $region17: #{_forward.1} parent=11 // pred_check
          %p168 = pneg %p82
        $region18: #{_forward.1} parent=11 // pred_check_branch
          %170 = sbr.rel (%p168) target = $region20
        $region19: #{_forward.1} parent=11 // pred_region
          _
        $region20: #{_forward.1} parent=11 // pred_fallthru
          _
        // Predicated region
        $region21: #{_forward.1} parent=11 // pred_check
          %p171 = pneg %p103
        $region22: #{_forward.1} parent=11 // pred_check_branch
          %173 = sbr.rel (%p171) target = $region24
        $region23: #{_forward.1} parent=11 // pred_region
          _
        $region24: #{_forward.1} parent=11 // pred_fallthru
          _
        // Predicated region
        $region25: #{_forward.1} parent=11 // pred_check
          %p174 = pneg %p124
        $region26: #{_forward.1} parent=11 // pred_check_branch
          %176 = sbr.rel (%p174) target = $region28
        $region27: #{_forward.1} parent=11 // pred_region
          _
        $region28: #{_forward.1} parent=11 // pred_fallthru
          _
      $region12: #{_forward.1} parent=5 // pred_fallthru
        _
      %p177 = scmp.lt.s32.totalorder %s14, 2
      // Predicated region
      $region29: #{_forward.1} parent=5 // pred_check
        %p178 = pneg %p177
      $region30: #{_forward.1} parent=5 // pred_check_branch
        %180 = sbr.rel (%p178) target = $region32
      $region31: #{_forward.1} parent=5 // pred_region
        // Predicated region
        $region33: #{_forward.1} parent=31 // pred_check
          %p181 = pneg %p34
        $region34: #{_forward.1} parent=31 // pred_check_branch
          %183 = sbr.rel (%p181) target = $region36
        $region35: #{_forward.1} parent=31 // pred_region
          %p184 = scmp.lt.s32.totalorder %s14, 1
          %s185 = scalar_select %p184, %s14, 1
          %s186 = smul.addr %s185, 8
          %s187 = scalar_lea.vmem %s0, %s186
        $region36: #{_forward.1} parent=31 // pred_fallthru
          _
      $region32: #{_forward.1} parent=5 // pred_fallthru
        _
      %p188 = scmp.le.s32.totalorder 1, %s14
      %p189 = scmp.lt.s32.totalorder %s14, 3
      %p190 = pnand %p188, %p189
      %p191 = pneg %p190
      // Predicated region
      $region37: #{_forward.1} parent=5 // pred_check
        _
      $region38: #{_forward.1} parent=5 // pred_check_branch
        %193 = sbr.rel (%p190) target = $region40
      $region39: #{_forward.1} parent=5 // pred_region
        %s194 = ssub.s32 %s14, 1
        %p195 = scmp.lt.s32.totalorder %s19, 1
        %s196 = scalar_select %p195, %s19, 1
        %s197 = smul.addr %s196, 8
        %s198 = scalar_lea.vmem %s0, %s197
        %p199 = pneg %p40
        %p200 = pneg %p37
        %p201 = pneg %p61
        %p202 = pneg %p58
        %p203 = pneg %p82
        %p204 = pneg %p79
        %p205 = pneg %p103
        %p206 = pneg %p100
        %p207 = pneg %p124
        %p208 = pneg %p121
        %p209 = pneg %p150
        %p210 = pneg %p147
        %s211 = sand.u32 %s137, 1
        %s212 = scalar_lea.sflag [#allocation3], %s211
        %s213 = sand.u32 %s137, 1
        %s214 = smul.addr %s213, 8
        %s215 = scalar_lea.vmem [#allocation2], %s214
        %p216 = scmp.lt.s32.totalorder %s19, 1
        %s217 = scalar_select %p216, %s19, 1
        %s218 = smul.addr %s217, 8
        %s219 = scalar_lea.vmem %s0, %s218
        %v221 = vld [vmem:[%s219] sm:$0xff]
        %v222 = vpack.c.bf16 %v221, %v221
        %v223 = vld [vmem:[%s1] sm:$0xf]
        %v224 = vld [vmem:[%s1 + $0x4] sm:$0xf]
        %v225 = vld [vmem:[%s1 + $0x8] sm:$0xf]
        %v226 = vld [vmem:[%s1 + $0xc] sm:$0xf]
        %v227 = vld [vmem:[%s2] sm:$0x1]
        %v229 = vperm.slane %v227, 0
        %v235 = vunpack.c.l.b16 %v223
        %v236 = vunpack.c.l.b16 %v224
        %v237 = vunpack.c.l.b16 %v225
        %v238 = vunpack.c.l.b16 %v226
        %v239 = vpack.c.b16 %v236, %v235
        %v240 = vpack.c.b16 %v238, %v237
        %vm243 = vcmask 261120
        %v245 = vsel %vm243, %v222, 0
        %247 = vmatpush.bf16.msra.mxu0 0
        %248 = vmatpush.bf16.msra.mxu0 0
        %249 = vmatpush.bf16.msra.mxu0 0
        %250 = vmatpush.bf16.msra.mxu0 0
        %251 = vmatpush.bf16.msra.mxu0 0
        %252 = vmatpush.bf16.msra.mxu0 0
        %253 = vmatpush.bf16.msra.mxu0 %v240
        %254 = vmatpush.bf16.msra.mxu0 %v239
        %255 = vmatmul.bf16.gmra.mxu0 %v245
        %v256 = vpop.f32.mrf.mxu0
        %v257 = vadd.f32 %v229, %v256
        %v258 = vpop.f32.mrf.mxu0
        %259 = vdwg.mxu0
        %v260 = vmax.f32 %v257, 0.0
        %v261 = vpack.c.bf16 %v260, %v260
        %v262 = vld [vmem:[%s3] sm:$0xf]
        %v263 = vld [vmem:[%s3 + $0x4] sm:$0xf]
        %v264 = vld [vmem:[%s3 + $0x8] sm:$0xf]
        %v265 = vld [vmem:[%s3 + $0xc] sm:$0xf]
        %v266 = vld [vmem:[%s3 + $0x10] sm:$0xf]
        %v267 = vld [vmem:[%s3 + $0x14] sm:$0xf]
        %v268 = vld [vmem:[%s3 + $0x18] sm:$0xf]
        %v269 = vld [vmem:[%s3 + $0x1c] sm:$0xf]
        %v270 = vld [vmem:[%s3 + $0x20] sm:$0xf]
        %v271 = vld [vmem:[%s3 + $0x24] sm:$0xf]
        %v272 = vld [vmem:[%s3 + $0x28] sm:$0xf]
        %v273 = vld [vmem:[%s3 + $0x2c] sm:$0xf]
        %v274 = vld [vmem:[%s3 + $0x30] sm:$0xf]
        %v275 = vld [vmem:[%s3 + $0x34] sm:$0xf]
        %v276 = vld [vmem:[%s3 + $0x38] sm:$0xf]
        %v277 = vld [vmem:[%s3 + $0x3c] sm:$0xf]
        %v278 = vld [vmem:[%s4] sm:$0x1]
        %v280 = vperm.slane %v278, 0
        %v298 = vunpack.c.l.b16 %v262
        %v299 = vunpack.c.l.b16 %v263
        %v300 = vunpack.c.l.b16 %v264
        %v301 = vunpack.c.l.b16 %v265
        %v302 = vunpack.c.l.b16 %v266
        %v303 = vunpack.c.l.b16 %v267
        %v304 = vunpack.c.l.b16 %v268
        %v305 = vunpack.c.l.b16 %v269
        %v306 = vunpack.c.l.b16 %v270
        %v307 = vunpack.c.l.b16 %v271
        %v308 = vunpack.c.l.b16 %v272
        %v309 = vunpack.c.l.b16 %v273
        %v310 = vunpack.c.l.b16 %v274
        %v311 = vunpack.c.l.b16 %v275
        %v312 = vunpack.c.l.b16 %v276
        %v313 = vunpack.c.l.b16 %v277
        %v314 = vpack.c.b16 %v299, %v298
        %v315 = vpack.c.b16 %v301, %v300
        %v316 = vpack.c.b16 %v303, %v302
        %v317 = vpack.c.b16 %v305, %v304
        %v318 = vpack.c.b16 %v307, %v306
        %v319 = vpack.c.b16 %v309, %v308
        %v320 = vpack.c.b16 %v311, %v310
        %v321 = vpack.c.b16 %v313, %v312
        %330 = vmatpush.bf16.msra.mxu0 %v321
        %331 = vmatpush.bf16.msra.mxu0 %v320
        %332 = vmatpush.bf16.msra.mxu0 %v319
        %333 = vmatpush.bf16.msra.mxu0 %v318
        %334 = vmatpush.bf16.msra.mxu0 %v317
        %335 = vmatpush.bf16.msra.mxu0 %v316
        %336 = vmatpush.bf16.msra.mxu0 %v315
        %337 = vmatpush.bf16.msra.mxu0 %v314
        %338 = vmatmul.bf16.gmra.mxu0 %v261
        %v339 = vpop.f32.mrf.mxu0
        %v340 = vadd.f32 %v280, %v339
        %v341 = vpop.f32.mrf.mxu0
        %342 = vdwg.mxu0
        %vm343 = vcmask 80896
        %344 = vst.msk [vmem:[%s215] sm:$0xff] %vm343, %v340
        %s345 = sand.u32 %s137, 1
        %s346 = scalar_lea.sflag [#allocation3], %s345
        %s347 = sand.u32 %s137, 1
        %s348 = smul.addr %s347, 8
        %s349 = scalar_lea.vmem [#allocation2], %s348
        // Predicated region
        $region41: #{_forward.1} parent=39 // pred_check
          %p350 = pneg %p147
        $region42: #{_forward.1} parent=39 // pred_check_branch
          %352 = sbr.rel (%p350) target = $region44
        $region43: #{_forward.1} parent=39 // pred_region
          %354 = vsyncadd %s346, 0
          %s355 = smul.addr %s19, 8
          %s356 = scalar_lea.hbm %s5, %s355
          %s358 = sshll.u32 %s349, 4
          %s359 = int_to_ptr.vmem [resolvable:$true] %s358
          %s360 = sshll.u32 %s356, 4
          %s361 = int_to_ptr.hbm [resolvable:$true] %s360
          %363 = dma.vmem_to_hbm [thread:$0]  %s359, 128, %s361, %s346
        $region44: #{_forward.1} parent=39 // pred_fallthru
          _
      $region40: #{_forward.1} parent=5 // pred_fallthru
        _
      %p364 = scmp.le.s32.totalorder 2, %s14
      // Predicated region
      $region45: #{_forward.1} parent=5 // pred_check
        %p365 = pneg %p364
      $region46: #{_forward.1} parent=5 // pred_check_branch
        %367 = sbr.rel (%p365) target = $region48
      $region47: #{_forward.1} parent=5 // pred_region
        %s368 = ssub.s32 %s14, 2
        // Predicated region
        $region49: #{_forward.1} parent=47 // pred_check
          %p369 = pneg %p153
        $region50: #{_forward.1} parent=47 // pred_check_branch
          %371 = sbr.rel (%p369) target = $region52
        $region51: #{_forward.1} parent=47 // pred_region
          %s372 = sand.u32 %s138, 1
          %s373 = scalar_lea.sflag [#allocation3], %s372
          %s374 = sand.u32 %s138, 1
          %s375 = smul.addr %s374, 8
          %s376 = scalar_lea.vmem [#allocation2], %s375
          %378 = dma.done %s373, 128
        $region52: #{_forward.1} parent=47 // pred_fallthru
          _
      $region48: #{_forward.1} parent=5 // pred_fallthru
        _
    $region6: #{_forward.1} parent=1 // loop_footer
      %s18 = sadd.s32 1, %s14
    $region7: #{_forward.1} parent=1 // loop_footer_branch
      %13 = sbr.rel target = $region3
    $region8: #{_forward.1} parent=1 // loop_exit
      _
    %379 = vsyncpa [#allocation3], 1
    %s380 = scalar_lea.sflag [#allocation3], 1
    %381 = vsyncpa %s380, 1

</llo_original>
